<compile_context>
chip_gen: v7x
topology: tpu7x:2x2x1
jax: 0.10.0
libtpu: 0.0.40
codegen_flags: <defaults>
</compile_context>

<pallas_src>
import functools

import jax
import jax.numpy as jnp
from jax import lax
from jax.experimental import pallas as pl
from jax.experimental.pallas import tpu as pltpu


EMB_DIM = 50
HIDDEN = 10
_MAX_TILE_B = 1024     # rows per grid step (multiple of 8)
_GROUP = 8             # rows gathered per aligned scratch store (VMEM path)
_NBUF = 32             # in-flight row DMAs per table (HBM fallback path)


def _round_up(x, m):
    return (x + m - 1) // m * m


# ---------------------------------------------------------------------------
# Shared MLP tail:
#   concat(u, m) @ W1.T == u @ W1[:, :50].T + m @ W1[:, 50:].T   (exact)
# so no lane-axis concat is ever needed.  The 10->1 linear is a VPU multiply
# + lane reduce (w2 kept as a (1, 10) row) instead of a K=10/N=1 MXU push.
# ---------------------------------------------------------------------------
def _mlp_tail(u_buf, m_buf, w1u_ref, w1m_ref, b1_ref, w2_ref, b2_ref, o_ref):
    h = (jnp.dot(u_buf[...], w1u_ref[...], preferred_element_type=jnp.float32)
         + jnp.dot(m_buf[...], w1m_ref[...], preferred_element_type=jnp.float32)
         + b1_ref[...])
    h = jnp.maximum(h, 0.0)                     # ReLU
    # Dropout(0.5): identity in eval mode.
    y = jnp.sum(h * w2_ref[...], axis=-1, keepdims=True) + b2_ref[...]
    o_ref[...] = y.astype(o_ref.dtype)


# ---------------------------------------------------------------------------
# Fast path: embedding tables resident in VMEM, on-chip gather.
# ---------------------------------------------------------------------------
def _vmem_gather_kernel(tile_b,
                        users_ref, movies_ref,              # scalar prefetch (SMEM)
                        utab_ref, mtab_ref,                 # tables (VMEM, loaded once)
                        w1u_ref, w1m_ref, b1_ref, w2_ref, b2_ref,
                        o_ref,
                        u_buf, m_buf):
    base = pl.program_id(0) * tile_b

    def gather_group(g, carry):
        # 8 rows per iteration: SMEM index reads + dynamic table-row loads,
        # assembled with a sublane concat and written with one aligned
        # (8, EMB_DIM) store per table (no per-row masked stores).
        r0 = pl.multiple_of(g * _GROUP, _GROUP)
        u_rows = []
        m_rows = []
        for j in range(_GROUP):                 # static unroll inside the body
            u = users_ref[base + r0 + j]
            m = movies_ref[base + r0 + j]
            u_rows.append(utab_ref[pl.ds(u, 1), :])     # (1, EMB_DIM)
            m_rows.append(mtab_ref[pl.ds(m, 1), :])
        u_buf[pl.ds(r0, _GROUP), :] = jnp.concatenate(u_rows, axis=0)
        m_buf[pl.ds(r0, _GROUP), :] = jnp.concatenate(m_rows, axis=0)
        return carry

    lax.fori_loop(0, tile_b // _GROUP, gather_group, 0)
    _mlp_tail(u_buf, m_buf, w1u_ref, w1m_ref, b1_ref, w2_ref, b2_ref, o_ref)


# ---------------------------------------------------------------------------
# Fallback path: tables stay in HBM, manual per-row DMA gather (deep pipeline).
# Only selected when the tables do not fit the chip's VMEM budget.
# ---------------------------------------------------------------------------
def _hbm_gather_kernel(tile_b, nbuf,
                       users_ref, movies_ref,               # scalar prefetch (SMEM)
                       utab_ref, mtab_ref,                  # tables (HBM, pl.ANY)
                       w1u_ref, w1m_ref, b1_ref, w2_ref, b2_ref,
                       o_ref,
                       u_buf, m_buf, sems):
    base = pl.program_id(0) * tile_b
    last = pl.num_programs(0) * tile_b - 1

    def issue(r, u_idx, m_idx):
        slot = r % nbuf
        pltpu.make_async_copy(utab_ref.at[pl.ds(u_idx, 1)],
                              u_buf.at[pl.ds(r, 1)],
                              sems.at[0, slot]).start()
        pltpu.make_async_copy(mtab_ref.at[pl.ds(m_idx, 1)],
                              m_buf.at[pl.ds(r, 1)],
                              sems.at[1, slot]).start()

    # Prime the DMA pipeline with nbuf rows per table.
    for r in range(nbuf):
        issue(r, users_ref[base + r], movies_ref[base + r])

    def body(r, carry):
        slot = r % nbuf
        # Read the next row's indices BEFORE the waits: a DMA wait breaks
        # SMEM sst->sld forwarding, so scalar reads after it serialize.
        nxt = jnp.minimum(base + r + nbuf, last)
        u_nxt = users_ref[nxt]
        m_nxt = movies_ref[nxt]
        pltpu.make_async_copy(utab_ref.at[pl.ds(0, 1)],
                              u_buf.at[pl.ds(r, 1)],
                              sems.at[0, slot]).wait()
        pltpu.make_async_copy(mtab_ref.at[pl.ds(0, 1)],
                              m_buf.at[pl.ds(r, 1)],
                              sems.at[1, slot]).wait()

        @pl.when(r + nbuf < tile_b)
        def _():
            issue(r + nbuf, u_nxt, m_nxt)

        return carry

    lax.fori_loop(0, tile_b, body, 0, unroll=8)
    _mlp_tail(u_buf, m_buf, w1u_ref, w1m_ref, b1_ref, w2_ref, b2_ref, o_ref)


# ---------------------------------------------------------------------------
# Host-side wrapper.
# ---------------------------------------------------------------------------
def prepare_params(params):
    """One-time weight layout preparation (hoisted out of the per-call path)."""
    w1 = params["fc_w"]                                  # (10, 100) torch (out, in)
    return {
        "user_embedd": params["user_embedd"],            # (n_users, 50)
        "movie_embedd": params["movie_embedd"],          # (n_movies, 50)
        "w1u": jnp.transpose(w1[:, :EMB_DIM]),           # (50, 10)
        "w1m": jnp.transpose(w1[:, EMB_DIM:]),           # (50, 10)
        "b1": params["fc_b"].reshape(1, HIDDEN),         # (1, 10)
        "w2": params["out_w"].reshape(1, HIDDEN),        # (1, 10) row vector
        "b2": params["out_b"].reshape(1, 1),             # (1, 1)
    }


def _vmem_capacity_bytes():
    try:
        return int(pltpu.get_tpu_info().vmem_capacity_bytes)
    except Exception:
        return 64 * 1024 * 1024          # conservative (v7x-sized) if query fails


def _table_vmem_bytes(n_rows):
    # f32 rows are lane-padded to 128 and sublane-padded to 8 once in VMEM.
    return _round_up(n_rows, 8) * 128 * 4


@jax.jit
def recommender_forward(prepared, users, movies):
    """users, movies: int index vectors of shape (B,). Returns (B, 1) f32."""
    n_users = prepared["user_embedd"].shape[0]
    n_movies = prepared["movie_embedd"].shape[0]
    B = users.shape[0]

    # Tile the batch so the grid has >= 4 steps when the batch allows it
    # (lets "parallel" shard tiles across both v7x TensorCores).
    tile_b = max(8, min(_MAX_TILE_B, _round_up(pl.cdiv(B, 4), 8)))
    bp = _round_up(B, tile_b)
    grid = bp // tile_b

    # Clamp defensively so an out-of-range index can never become a wild
    # VMEM read / DMA fault (valid inputs are unaffected), then pad to a
    # whole number of tiles (pad rows gather row 0; outputs sliced off).
    users_i = jnp.clip(users.astype(jnp.int32), 0, n_users - 1)
    movies_i = jnp.clip(movies.astype(jnp.int32), 0, n_movies - 1)
    users_p = jnp.zeros((bp,), jnp.int32).at[:B].set(users_i)
    movies_p = jnp.zeros((bp,), jnp.int32).at[:B].set(movies_i)

    # Generation-aware dispatch: gather from VMEM-resident tables when they
    # fit, otherwise fall back to the manual per-row HBM DMA gather.
    vmem_cap = _vmem_capacity_bytes()
    # x2: auto-pipelined input blocks are double-buffered.
    tables_bytes = 2 * (_table_vmem_bytes(n_users) + _table_vmem_bytes(n_movies))
    scratch_bytes = 2 * tile_b * 128 * 4          # u_buf + m_buf (lane padded)
    headroom = 12 * 1024 * 1024                   # weights, out blocks, internal scratch
    use_vmem_tables = tables_bytes + scratch_bytes + headroom <= vmem_cap

    vmem_limit = max(32 * 1024 * 1024,
                     min(vmem_cap - 4 * 1024 * 1024,
                         tables_bytes + scratch_bytes + 16 * 1024 * 1024))

    weight_specs = [
        pl.BlockSpec((EMB_DIM, HIDDEN), lambda i, u, m: (0, 0)),   # w1u
        pl.BlockSpec((EMB_DIM, HIDDEN), lambda i, u, m: (0, 0)),   # w1m
        pl.BlockSpec((1, HIDDEN), lambda i, u, m: (0, 0)),         # b1
        pl.BlockSpec((1, HIDDEN), lambda i, u, m: (0, 0)),         # w2
        pl.BlockSpec((1, 1), lambda i, u, m: (0, 0)),              # b2
    ]
    out_spec = pl.BlockSpec((tile_b, 1), lambda i, u, m: (i, 0))

    if use_vmem_tables:
        kernel = functools.partial(_vmem_gather_kernel, tile_b)
        table_specs = [
            pl.BlockSpec((n_users, EMB_DIM), lambda i, u, m: (0, 0)),   # whole table,
            pl.BlockSpec((n_movies, EMB_DIM), lambda i, u, m: (0, 0)),  # DMA'd once
        ]
        scratch = [
            pltpu.VMEM((tile_b, EMB_DIM), jnp.float32),   # gathered user rows
            pltpu.VMEM((tile_b, EMB_DIM), jnp.float32),   # gathered movie rows
        ]
    else:
        nbuf = min(_NBUF, tile_b)
        kernel = functools.partial(_hbm_gather_kernel, tile_b, nbuf)
        table_specs = [
            pl.BlockSpec(memory_space=pl.ANY),            # tables stay in HBM
            pl.BlockSpec(memory_space=pl.ANY),
        ]
        scratch = [
            pltpu.VMEM((tile_b, EMB_DIM), jnp.float32),
            pltpu.VMEM((tile_b, EMB_DIM), jnp.float32),
            pltpu.SemaphoreType.DMA((2, nbuf)),
        ]

    out = pl.pallas_call(
        kernel,
        out_shape=jax.ShapeDtypeStruct((bp, 1), jnp.float32),
        grid_spec=pltpu.PrefetchScalarGridSpec(
            num_scalar_prefetch=2,                 # users_p, movies_p -> SMEM
            grid=(grid,),
            in_specs=table_specs + weight_specs,
            out_specs=out_spec,
            scratch_shapes=scratch,
        ),
        compiler_params=pltpu.CompilerParams(
            dimension_semantics=("parallel",),     # batch tiles shard across TCs (v7x)
            vmem_limit_bytes=int(vmem_limit),
        ),
    )(users_p, movies_p,
      prepared["user_embedd"], prepared["movie_embedd"],
      prepared["w1u"], prepared["w1m"], prepared["b1"],
      prepared["w2"], prepared["b2"])
    return out[:B]


# ---------------------------------------------------------------------------
# Parameter init + pure-JAX reference (for correctness check).
# ---------------------------------------------------------------------------
def init_params(key, n_users, n_movies):
    k = jax.random.split(key, 6)
    # nn.Embedding default init: N(0, 1)
    user_embedd = jax.random.normal(k[0], (n_users, EMB_DIM), jnp.float32)
    movie_embedd = jax.random.normal(k[1], (n_movies, EMB_DIM), jnp.float32)
    # nn.Linear default init: U(-1/sqrt(in), 1/sqrt(in))
    lim1 = 1.0 / jnp.sqrt(100.0)
    fc_w = jax.random.uniform(k[2], (HIDDEN, 100), jnp.float32, -lim1, lim1)
    fc_b = jax.random.uniform(k[3], (HIDDEN,), jnp.float32, -lim1, lim1)
    lim2 = 1.0 / jnp.sqrt(float(HIDDEN))
    out_w = jax.random.uniform(k[4], (1, HIDDEN), jnp.float32, -lim2, lim2)
    out_b = jax.random.uniform(k[5], (1,), jnp.float32, -lim2, lim2)
    return {
        "user_embedd": user_embedd,
        "movie_embedd": movie_embedd,
        "fc_w": fc_w,
        "fc_b": fc_b,
        "out_w": out_w,
        "out_b": out_b,
    }


def _reference_forward(params, users, movies):
    u = jnp.take(params["user_embedd"], users, axis=0)
    m = jnp.take(params["movie_embedd"], movies, axis=0)
    x = jnp.concatenate([u, m], axis=1)                       # (B, 100)
    h = jnp.maximum(x @ params["fc_w"].T + params["fc_b"], 0.0)
    return h @ params["out_w"].T + params["out_b"]


if __name__ == "__main__":
    key = jax.random.PRNGKey(0)
    n_users, n_movies, batch = 64, 48, 8

    pkey, ukey, mkey = jax.random.split(key, 3)
    params = init_params(pkey, n_users, n_movies)
    prepared = prepare_params(params)   # one-time weight layout prep (hoisted)

    users = jax.random.randint(ukey, (batch,), 0, n_users, dtype=jnp.int32)
    movies = jax.random.randint(mkey, (batch,), 0, n_movies, dtype=jnp.int32)

    out = recommender_forward(prepared, users, movies)
    out = jax.block_until_ready(out)

    ref = _reference_forward(params, users, movies)
    assert out.shape == (batch, 1), out.shape
    assert jnp.allclose(out, ref, atol=1e-5, rtol=1e-5), (out, ref)

    print("KERNEL_OK")
</pallas_src>

<mosaic_0001>
module attributes {stable_mosaic.version = 11 : i64} {
  func.func @_vmem_gather_kernel(%arg0: i32, %arg1: memref<8xi32, #tpu.memory_space<smem>>, %arg2: memref<8xi32, #tpu.memory_space<smem>>, %arg3: memref<64x50xf32, #tpu.memory_space<vmem>>, %arg4: memref<48x50xf32, #tpu.memory_space<vmem>>, %arg5: memref<50x10xf32, #tpu.memory_space<vmem>>, %arg6: memref<50x10xf32, #tpu.memory_space<vmem>>, %arg7: memref<1x10xf32, #tpu.memory_space<vmem>>, %arg8: memref<1x10xf32, #tpu.memory_space<vmem>>, %arg9: memref<1x1xf32, #tpu.memory_space<vmem>>, %arg10: memref<8x1xf32, #tpu.memory_space<vmem>>, %arg11: memref<8x50xf32, #tpu.memory_space<vmem>>, %arg12: memref<8x50xf32, #tpu.memory_space<vmem>>) attributes {dimension_semantics = [#tpu.dimension_semantics<parallel>], iteration_bounds = array<i64: 1>, scalar_prefetch = 2 : i64, scratch_operands = 2 : i64, tpu.core_type = #tpu.core_type<tc>, window_params = [{pipeline_mode = #tpu.pipeline_mode<synchronous>, transform_indices = @transform_0, window_bounds = array<i64: 64, 50>}, {pipeline_mode = #tpu.pipeline_mode<synchronous>, transform_indices = @transform_1, window_bounds = array<i64: 48, 50>}, {pipeline_mode = #tpu.pipeline_mode<synchronous>, transform_indices = @transform_2, window_bounds = array<i64: 50, 10>}, {pipeline_mode = #tpu.pipeline_mode<synchronous>, transform_indices = @transform_3, window_bounds = array<i64: 50, 10>}, {pipeline_mode = #tpu.pipeline_mode<synchronous>, transform_indices = @transform_4, window_bounds = array<i64: 1, 10>}, {pipeline_mode = #tpu.pipeline_mode<synchronous>, transform_indices = @transform_5, window_bounds = array<i64: 1, 10>}, {pipeline_mode = #tpu.pipeline_mode<synchronous>, transform_indices = @transform_6, window_bounds = array<i64: 1, 1>}, {transform_indices = @transform_7, window_bounds = array<i64: 8, 1>}]} {
    %c8_i32 = arith.constant 8 : i32
    %0 = arith.muli %arg0, %c8_i32 : i32
    %c0_i32 = arith.constant 0 : i32
    %c8_i32_0 = arith.constant 8 : i32
    %1 = arith.muli %c0_i32, %c8_i32_0 : i32
    %2 = tpu.assume_multiple %1, 8 : i32
    %3 = arith.addi %0, %2 : i32
    %c0_i32_1 = arith.constant 0 : i32
    %4 = arith.addi %3, %c0_i32_1 : i32
    %5 = arith.index_cast %4 : i32 to index
    %6 = memref.load %arg1[%5] : memref<8xi32, #tpu.memory_space<smem>>
    %7 = arith.addi %0, %2 : i32
    %c0_i32_2 = arith.constant 0 : i32
    %8 = arith.addi %7, %c0_i32_2 : i32
    %9 = arith.index_cast %8 : i32 to index
    %10 = memref.load %arg2[%9] : memref<8xi32, #tpu.memory_space<smem>>
    %11 = arith.index_cast %6 : i32 to index
    %c0 = arith.constant 0 : index
    %12 = vector.load %arg3[%11, %c0] : memref<64x50xf32, #tpu.memory_space<vmem>>, vector<1x50xf32>
    %13 = arith.index_cast %10 : i32 to index
    %c0_3 = arith.constant 0 : index
    %14 = vector.load %arg4[%13, %c0_3] : memref<48x50xf32, #tpu.memory_space<vmem>>, vector<1x50xf32>
    %15 = arith.addi %0, %2 : i32
    %c1_i32 = arith.constant 1 : i32
    %16 = arith.addi %15, %c1_i32 : i32
    %17 = arith.index_cast %16 : i32 to index
    %18 = memref.load %arg1[%17] : memref<8xi32, #tpu.memory_space<smem>>
    %19 = arith.addi %0, %2 : i32
    %c1_i32_4 = arith.constant 1 : i32
    %20 = arith.addi %19, %c1_i32_4 : i32
    %21 = arith.index_cast %20 : i32 to index
    %22 = memref.load %arg2[%21] : memref<8xi32, #tpu.memory_space<smem>>
    %23 = arith.index_cast %18 : i32 to index
    %c0_5 = arith.constant 0 : index
    %24 = vector.load %arg3[%23, %c0_5] : memref<64x50xf32, #tpu.memory_space<vmem>>, vector<1x50xf32>
    %25 = arith.index_cast %22 : i32 to index
    %c0_6 = arith.constant 0 : index
    %26 = vector.load %arg4[%25, %c0_6] : memref<48x50xf32, #tpu.memory_space<vmem>>, vector<1x50xf32>
    %27 = arith.addi %0, %2 : i32
    %c2_i32 = arith.constant 2 : i32
    %28 = arith.addi %27, %c2_i32 : i32
    %29 = arith.index_cast %28 : i32 to index
    %30 = memref.load %arg1[%29] : memref<8xi32, #tpu.memory_space<smem>>
    %31 = arith.addi %0, %2 : i32
    %c2_i32_7 = arith.constant 2 : i32
    %32 = arith.addi %31, %c2_i32_7 : i32
    %33 = arith.index_cast %32 : i32 to index
    %34 = memref.load %arg2[%33] : memref<8xi32, #tpu.memory_space<smem>>
    %35 = arith.index_cast %30 : i32 to index
    %c0_8 = arith.constant 0 : index
    %36 = vector.load %arg3[%35, %c0_8] : memref<64x50xf32, #tpu.memory_space<vmem>>, vector<1x50xf32>
    %37 = arith.index_cast %34 : i32 to index
    %c0_9 = arith.constant 0 : index
    %38 = vector.load %arg4[%37, %c0_9] : memref<48x50xf32, #tpu.memory_space<vmem>>, vector<1x50xf32>
    %39 = arith.addi %0, %2 : i32
    %c3_i32 = arith.constant 3 : i32
    %40 = arith.addi %39, %c3_i32 : i32
    %41 = arith.index_cast %40 : i32 to index
    %42 = memref.load %arg1[%41] : memref<8xi32, #tpu.memory_space<smem>>
    %43 = arith.addi %0, %2 : i32
    %c3_i32_10 = arith.constant 3 : i32
    %44 = arith.addi %43, %c3_i32_10 : i32
    %45 = arith.index_cast %44 : i32 to index
    %46 = memref.load %arg2[%45] : memref<8xi32, #tpu.memory_space<smem>>
    %47 = arith.index_cast %42 : i32 to index
    %c0_11 = arith.constant 0 : index
    %48 = vector.load %arg3[%47, %c0_11] : memref<64x50xf32, #tpu.memory_space<vmem>>, vector<1x50xf32>
    %49 = arith.index_cast %46 : i32 to index
    %c0_12 = arith.constant 0 : index
    %50 = vector.load %arg4[%49, %c0_12] : memref<48x50xf32, #tpu.memory_space<vmem>>, vector<1x50xf32>
    %51 = arith.addi %0, %2 : i32
    %c4_i32 = arith.constant 4 : i32
    %52 = arith.addi %51, %c4_i32 : i32
    %53 = arith.index_cast %52 : i32 to index
    %54 = memref.load %arg1[%53] : memref<8xi32, #tpu.memory_space<smem>>
    %55 = arith.addi %0, %2 : i32
    %c4_i32_13 = arith.constant 4 : i32
    %56 = arith.addi %55, %c4_i32_13 : i32
    %57 = arith.index_cast %56 : i32 to index
    %58 = memref.load %arg2[%57] : memref<8xi32, #tpu.memory_space<smem>>
    %59 = arith.index_cast %54 : i32 to index
    %c0_14 = arith.constant 0 : index
    %60 = vector.load %arg3[%59, %c0_14] : memref<64x50xf32, #tpu.memory_space<vmem>>, vector<1x50xf32>
    %61 = arith.index_cast %58 : i32 to index
    %c0_15 = arith.constant 0 : index
    %62 = vector.load %arg4[%61, %c0_15] : memref<48x50xf32, #tpu.memory_space<vmem>>, vector<1x50xf32>
    %63 = arith.addi %0, %2 : i32
    %c5_i32 = arith.constant 5 : i32
    %64 = arith.addi %63, %c5_i32 : i32
    %65 = arith.index_cast %64 : i32 to index
    %66 = memref.load %arg1[%65] : memref<8xi32, #tpu.memory_space<smem>>
    %67 = arith.addi %0, %2 : i32
    %c5_i32_16 = arith.constant 5 : i32
    %68 = arith.addi %67, %c5_i32_16 : i32
    %69 = arith.index_cast %68 : i32 to index
    %70 = memref.load %arg2[%69] : memref<8xi32, #tpu.memory_space<smem>>
    %71 = arith.index_cast %66 : i32 to index
    %c0_17 = arith.constant 0 : index
    %72 = vector.load %arg3[%71, %c0_17] : memref<64x50xf32, #tpu.memory_space<vmem>>, vector<1x50xf32>
    %73 = arith.index_cast %70 : i32 to index
    %c0_18 = arith.constant 0 : index
    %74 = vector.load %arg4[%73, %c0_18] : memref<48x50xf32, #tpu.memory_space<vmem>>, vector<1x50xf32>
    %75 = arith.addi %0, %2 : i32
    %c6_i32 = arith.constant 6 : i32
    %76 = arith.addi %75, %c6_i32 : i32
    %77 = arith.index_cast %76 : i32 to index
    %78 = memref.load %arg1[%77] : memref<8xi32, #tpu.memory_space<smem>>
    %79 = arith.addi %0, %2 : i32
    %c6_i32_19 = arith.constant 6 : i32
    %80 = arith.addi %79, %c6_i32_19 : i32
    %81 = arith.index_cast %80 : i32 to index
    %82 = memref.load %arg2[%81] : memref<8xi32, #tpu.memory_space<smem>>
    %83 = arith.index_cast %78 : i32 to index
    %c0_20 = arith.constant 0 : index
    %84 = vector.load %arg3[%83, %c0_20] : memref<64x50xf32, #tpu.memory_space<vmem>>, vector<1x50xf32>
    %85 = arith.index_cast %82 : i32 to index
    %c0_21 = arith.constant 0 : index
    %86 = vector.load %arg4[%85, %c0_21] : memref<48x50xf32, #tpu.memory_space<vmem>>, vector<1x50xf32>
    %87 = arith.addi %0, %2 : i32
    %c7_i32 = arith.constant 7 : i32
    %88 = arith.addi %87, %c7_i32 : i32
    %89 = arith.index_cast %88 : i32 to index
    %90 = memref.load %arg1[%89] : memref<8xi32, #tpu.memory_space<smem>>
    %91 = arith.addi %0, %2 : i32
    %c7_i32_22 = arith.constant 7 : i32
    %92 = arith.addi %91, %c7_i32_22 : i32
    %93 = arith.index_cast %92 : i32 to index
    %94 = memref.load %arg2[%93] : memref<8xi32, #tpu.memory_space<smem>>
    %95 = arith.index_cast %90 : i32 to index
    %c0_23 = arith.constant 0 : index
    %96 = vector.load %arg3[%95, %c0_23] : memref<64x50xf32, #tpu.memory_space<vmem>>, vector<1x50xf32>
    %97 = arith.index_cast %94 : i32 to index
    %c0_24 = arith.constant 0 : index
    %98 = vector.load %arg4[%97, %c0_24] : memref<48x50xf32, #tpu.memory_space<vmem>>, vector<1x50xf32>
    %99 = tpu.concatenate %12, %24, %36, %48, %60, %72, %84, %96 in 0 : vector<1x50xf32>, vector<1x50xf32>, vector<1x50xf32>, vector<1x50xf32>, vector<1x50xf32>, vector<1x50xf32>, vector<1x50xf32>, vector<1x50xf32> -> vector<8x50xf32>
    %100 = arith.index_cast %2 : i32 to index
    %c0_25 = arith.constant 0 : index
    %101 = vector.load %arg11[%100, %c0_25] : memref<8x50xf32, #tpu.memory_space<vmem>>, vector<8x50xf32>
    tpu.vector_store %arg11[%100, %c0_25], %99 {strides = array<i32>} : memref<8x50xf32, #tpu.memory_space<vmem>>, vector<8x50xf32>,
    %102 = tpu.concatenate %14, %26, %38, %50, %62, %74, %86, %98 in 0 : vector<1x50xf32>, vector<1x50xf32>, vector<1x50xf32>, vector<1x50xf32>, vector<1x50xf32>, vector<1x50xf32>, vector<1x50xf32>, vector<1x50xf32> -> vector<8x50xf32>
    %103 = arith.index_cast %2 : i32 to index
    %c0_26 = arith.constant 0 : index
    %104 = vector.load %arg12[%103, %c0_26] : memref<8x50xf32, #tpu.memory_space<vmem>>, vector<8x50xf32>
    tpu.vector_store %arg12[%103, %c0_26], %102 {strides = array<i32>} : memref<8x50xf32, #tpu.memory_space<vmem>>, vector<8x50xf32>,
    %c1_i32_27 = arith.constant 1 : i32
    %c0_28 = arith.constant 0 : index
    %c0_29 = arith.constant 0 : index
    %105 = vector.load %arg11[%c0_28, %c0_29] : memref<8x50xf32, #tpu.memory_space<vmem>>, vector<8x50xf32>
    %c0_30 = arith.constant 0 : index
    %c0_31 = arith.constant 0 : index
    %106 = vector.load %arg5[%c0_30, %c0_31] : memref<50x10xf32, #tpu.memory_space<vmem>>, vector<50x10xf32>
    %cst = arith.constant dense<0.000000e+00> : vector<8x10xf32>
    %107 = tpu.matmul %105, %106, %cst {dimension_numbers = #tpu.dot_dimension_numbers<[1], [0], [0], [1], [0, 0, 1, 1], [], []>} : vector<8x50xf32>, vector<50x10xf32>, vector<8x10xf32> -> vector<8x10xf32>
    %c0_32 = arith.constant 0 : index
    %c0_33 = arith.constant 0 : index
    %108 = vector.load %arg12[%c0_32, %c0_33] : memref<8x50xf32, #tpu.memory_space<vmem>>, vector<8x50xf32>
    %c0_34 = arith.constant 0 : index
    %c0_35 = arith.constant 0 : index
    %109 = vector.load %arg6[%c0_34, %c0_35] : memref<50x10xf32, #tpu.memory_space<vmem>>, vector<50x10xf32>
    %cst_36 = arith.constant dense<0.000000e+00> : vector<8x10xf32>
    %110 = tpu.matmul %108, %109, %cst_36 {dimension_numbers = #tpu.dot_dimension_numbers<[1], [0], [0], [1], [0, 0, 1, 1], [], []>} : vector<8x50xf32>, vector<50x10xf32>, vector<8x10xf32> -> vector<8x10xf32>
    %111 = arith.addf %107, %110 : vector<8x10xf32>
    %c0_37 = arith.constant 0 : index
    %c0_38 = arith.constant 0 : index
    %112 = vector.load %arg7[%c0_37, %c0_38] : memref<1x10xf32, #tpu.memory_space<vmem>>, vector<1x10xf32>
    %113 = vector.broadcast %112 : vector<1x10xf32> to vector<8x10xf32>
    %114 = arith.addf %111, %113 : vector<8x10xf32>
    %cst_39 = arith.constant 0.000000e+00 : f32
    %115 = vector.broadcast %cst_39 : f32 to vector<8x10xf32>
    %116 = arith.maximumf %114, %115 : vector<8x10xf32>
    %c0_40 = arith.constant 0 : index
    %c0_41 = arith.constant 0 : index
    %117 = vector.load %arg8[%c0_40, %c0_41] : memref<1x10xf32, #tpu.memory_space<vmem>>, vector<1x10xf32>
    %118 = vector.broadcast %117 : vector<1x10xf32> to vector<8x10xf32>
    %119 = arith.mulf %116, %118 : vector<8x10xf32>
    %cst_42 = arith.constant dense<0.000000e+00> : vector<8xf32>
    %120 = vector.multi_reduction <add>, %119, %cst_42 [1] : vector<8x10xf32> to vector<8xf32>
    %121 = vector.shape_cast %120 : vector<8xf32> to vector<8x1xf32>
    %c0_43 = arith.constant 0 : index
    %c0_44 = arith.constant 0 : index
    %122 = vector.load %arg9[%c0_43, %c0_44] : memref<1x1xf32, #tpu.memory_space<vmem>>, vector<1x1xf32>
    %123 = vector.broadcast %122 : vector<1x1xf32> to vector<8x1xf32>
    %124 = arith.addf %121, %123 : vector<8x1xf32>
    %c0_45 = arith.constant 0 : index
    %c0_46 = arith.constant 0 : index
    %125 = vector.load %arg10[%c0_45, %c0_46] : memref<8x1xf32, #tpu.memory_space<vmem>>, vector<8x1xf32>
    tpu.vector_store %arg10[%c0_45, %c0_46], %124 {strides = array<i32>} : memref<8x1xf32, #tpu.memory_space<vmem>>, vector<8x1xf32>,
    return
  }
  func.func @transform_0(%arg0: i32, %arg1: memref<8xi32, #tpu.memory_space<smem>>, %arg2: memref<8xi32, #tpu.memory_space<smem>>) -> (i32, i32) {
    %c0_i32 = arith.constant 0 : i32
    %c0_i32_0 = arith.constant 0 : i32
    %c0_i32_1 = arith.constant 0 : i32
    return %c0_i32, %c0_i32_0 : i32, i32
  }
  func.func @transform_1(%arg0: i32, %arg1: memref<8xi32, #tpu.memory_space<smem>>, %arg2: memref<8xi32, #tpu.memory_space<smem>>) -> (i32, i32) {
    %c0_i32 = arith.constant 0 : i32
    %c0_i32_0 = arith.constant 0 : i32
    %c0_i32_1 = arith.constant 0 : i32
    return %c0_i32, %c0_i32_0 : i32, i32
  }
  func.func @transform_2(%arg0: i32, %arg1: memref<8xi32, #tpu.memory_space<smem>>, %arg2: memref<8xi32, #tpu.memory_space<smem>>) -> (i32, i32) {
    %c0_i32 = arith.constant 0 : i32
    %c0_i32_0 = arith.constant 0 : i32
    %c0_i32_1 = arith.constant 0 : i32
    return %c0_i32, %c0_i32_0 : i32, i32
  }
  func.func @transform_3(%arg0: i32, %arg1: memref<8xi32, #tpu.memory_space<smem>>, %arg2: memref<8xi32, #tpu.memory_space<smem>>) -> (i32, i32) {
    %c0_i32 = arith.constant 0 : i32
    %c0_i32_0 = arith.constant 0 : i32
    %c0_i32_1 = arith.constant 0 : i32
    return %c0_i32, %c0_i32_0 : i32, i32
  }
  func.func @transform_4(%arg0: i32, %arg1: memref<8xi32, #tpu.memory_space<smem>>, %arg2: memref<8xi32, #tpu.memory_space<smem>>) -> (i32, i32) {
    %c0_i32 = arith.constant 0 : i32
    %c0_i32_0 = arith.constant 0 : i32
    %c0_i32_1 = arith.constant 0 : i32
    return %c0_i32, %c0_i32_0 : i32, i32
  }
  func.func @transform_5(%arg0: i32, %arg1: memref<8xi32, #tpu.memory_space<smem>>, %arg2: memref<8xi32, #tpu.memory_space<smem>>) -> (i32, i32) {
    %c0_i32 = arith.constant 0 : i32
    %c0_i32_0 = arith.constant 0 : i32
    %c0_i32_1 = arith.constant 0 : i32
    return %c0_i32, %c0_i32_0 : i32, i32
  }
  func.func @transform_6(%arg0: i32, %arg1: memref<8xi32, #tpu.memory_space<smem>>, %arg2: memref<8xi32, #tpu.memory_space<smem>>) -> (i32, i32) {
    %c0_i32 = arith.constant 0 : i32
    %c0_i32_0 = arith.constant 0 : i32
    %c0_i32_1 = arith.constant 0 : i32
    return %c0_i32, %c0_i32_0 : i32, i32
  }
  func.func @transform_7(%arg0: i32, %arg1: memref<8xi32, #tpu.memory_space<smem>>, %arg2: memref<8xi32, #tpu.memory_space<smem>>) -> (i32, i32) {
    %c0_i32 = arith.constant 0 : i32
    %c0_i32_0 = arith.constant 0 : i32
    return %arg0, %c0_i32 : i32, i32
  }
}

</mosaic_0001>

<llo_original>
// kernel: recommender_forward.1
$region0: #{recommender_forward.1}
  #allocation0 [shape = 'u32[]', space=smem, size = 0x4, offset = 0x4, fixed_abs, tag = 'smem constant byte address 0x4 - core index']
  #allocation1 [shape = 'u32[144,128]{1,0:T(1,128)}', space=vmem, size = 0x12000, scoped, tag = 'internal scratch']
  #allocation2 [shape = 'f32[8,50]{1,0:T(8,128)}', space=vmem, size = 0x1000, scoped, tag = 'scratch operand']
  #allocation3 [shape = 'f32[8,50]{1,0:T(8,128)}', space=vmem, size = 0x1000, scoped, tag = 'scratch operand']
  #allocation4 [shape = 's32[1]{0}', space=sflag, size = 0x4, scoped, tag = 'scoped memory for recommender_forward.1']
  #allocation5 [shape = 'u8[512]{0}', space=smem, size = 0x200, scoped, tag = 'prefetched SMEM operand 0']
  #allocation6 [shape = 'u8[512]{0}', space=smem, size = 0x200, scoped, tag = 'prefetched SMEM operand 1']
  #allocation7 [shape = 'f32[1,1]{1,0:T(1,128)S(1)}', space=vmem, size = 0x200, scoped, tag = 'scoped memory for recommender_forward.1']
  %s0 = inlined_call_operand.vmem [shape: s32[8], index: 0, kind: input, shape index: {}]
  %s1 = inlined_call_operand.vmem [shape: s32[8], index: 1, kind: input, shape index: {}]
  %s2 = inlined_call_operand.vmem [shape: f32[64,50], index: 2, kind: input, shape index: {}]
  %s3 = inlined_call_operand.vmem [shape: f32[48,50], index: 3, kind: input, shape index: {}]
  %s4 = inlined_call_operand.vmem [shape: f32[50,10], index: 4, kind: input, shape index: {}]
  %s5 = inlined_call_operand.vmem [shape: f32[50,10], index: 5, kind: input, shape index: {}]
  %s6 = inlined_call_operand.vmem [shape: f32[1,10], index: 6, kind: input, shape index: {}]
  %s7 = inlined_call_operand.vmem [shape: f32[1,10], index: 7, kind: input, shape index: {}]
  %s8 = inlined_call_operand.<no memory space> [shape: f32[1,1], index: 8, kind: input, shape index: {}]
  %s9 = inlined_call_operand.vmem [shape: f32[8,1], index: 9, kind: output, shape index: {}]
  %s10 = sld [smem:[#allocation0]]
  $region38: #{recommender_forward.1} parent=0
    _
  %s12 = ssub.s32 1, %s10
  %s13 = scalar_select 0, %s12, %s10
  %s14 = sshll.u32 %s0, 4
  %s15 = int_to_ptr.vmem [resolvable:$true] %s14
  %17 = dma.vmem_to_smem %s15, 16, [#allocation5], [#allocation4]
  %s18 = sshll.u32 %s1, 4
  %s19 = int_to_ptr.vmem [resolvable:$true] %s18
  %21 = dma.vmem_to_smem %s19, 16, [#allocation6], [#allocation4]
  %v22 = vstv %s8
  %23 = vst [vmem:[#allocation7] sm:$0x1] %v22
  %24 = dma.done [#allocation4], 32
  %25 = sfence
  // Predicated region
  $region2: #{recommender_forward.1} parent=0 // pred_check
    _
  $region3: #{recommender_forward.1} parent=0 // pred_check_branch
    %27 = sbr.rel (0) target = $region5
  $region4: #{recommender_forward.1} parent=0 // pred_region
    _
  $region5: #{recommender_forward.1} parent=0 // pred_fallthru
    _
  // Predicated region
  $region6: #{recommender_forward.1} parent=0 // pred_check
    _
  $region7: #{recommender_forward.1} parent=0 // pred_check_branch
    %29 = sbr.rel (0) target = $region9
  $region8: #{recommender_forward.1} parent=0 // pred_region
    _
  $region9: #{recommender_forward.1} parent=0 // pred_fallthru
    _
  // Predicated region
  $region10: #{recommender_forward.1} parent=0 // pred_check
    _
  $region11: #{recommender_forward.1} parent=0 // pred_check_branch
    %31 = sbr.rel (0) target = $region13
  $region12: #{recommender_forward.1} parent=0 // pred_region
    _
  $region13: #{recommender_forward.1} parent=0 // pred_fallthru
    _
  // Predicated region
  $region14: #{recommender_forward.1} parent=0 // pred_check
    _
  $region15: #{recommender_forward.1} parent=0 // pred_check_branch
    %33 = sbr.rel (0) target = $region17
  $region16: #{recommender_forward.1} parent=0 // pred_region
    _
  $region17: #{recommender_forward.1} parent=0 // pred_fallthru
    _
  // Predicated region
  $region18: #{recommender_forward.1} parent=0 // pred_check
    _
  $region19: #{recommender_forward.1} parent=0 // pred_check_branch
    %35 = sbr.rel (0) target = $region21
  $region20: #{recommender_forward.1} parent=0 // pred_region
    _
  $region21: #{recommender_forward.1} parent=0 // pred_fallthru
    _
  // Predicated region
  $region22: #{recommender_forward.1} parent=0 // pred_check
    _
  $region23: #{recommender_forward.1} parent=0 // pred_check_branch
    %37 = sbr.rel (0) target = $region25
  $region24: #{recommender_forward.1} parent=0 // pred_region
    _
  $region25: #{recommender_forward.1} parent=0 // pred_fallthru
    _
  // Predicated region
  $region26: #{recommender_forward.1} parent=0 // pred_check
    _
  $region27: #{recommender_forward.1} parent=0 // pred_check_branch
    %39 = sbr.rel (0) target = $region29
  $region28: #{recommender_forward.1} parent=0 // pred_region
    _
  $region29: #{recommender_forward.1} parent=0 // pred_fallthru
    _
  %s40 = smul.u32 0, 8
  %s41 = sadd.s32 %s40, 0
  %s42 = sld [smem:[#allocation5 + %s41]]
  %s43 = sld [smem:[#allocation6 + %s41]]
  %s44 = scalar_lea.vmem %s2, %s42
  %v45 = vld [vmem:[%s44] sm:$0x1]
  %s46 = scalar_lea.vmem %s3, %s43
  %v47 = vld [vmem:[%s46] sm:$0x1]
  %s48 = sadd.s32 %s41, 1
  %s49 = sld [smem:[#allocation5 + %s48]]
  %s50 = sld [smem:[#allocation6 + %s48]]
  %s51 = scalar_lea.vmem %s2, %s49
  %v52 = vld [vmem:[%s51] sm:$0x1]
  %s53 = scalar_lea.vmem %s3, %s50
  %v54 = vld [vmem:[%s53] sm:$0x1]
  %s55 = sadd.s32 %s41, 2
  %s56 = sld [smem:[#allocation5 + %s55]]
  %s57 = sld [smem:[#allocation6 + %s55]]
  %s58 = scalar_lea.vmem %s2, %s56
  %v59 = vld [vmem:[%s58] sm:$0x1]
  %s60 = scalar_lea.vmem %s3, %s57
  %v61 = vld [vmem:[%s60] sm:$0x1]
  %s62 = sadd.s32 %s41, 3
  %s63 = sld [smem:[#allocation5 + %s62]]
  %s64 = sld [smem:[#allocation6 + %s62]]
  %s65 = scalar_lea.vmem %s2, %s63
  %v66 = vld [vmem:[%s65] sm:$0x1]
  %s67 = scalar_lea.vmem %s3, %s64
  %v68 = vld [vmem:[%s67] sm:$0x1]
  %s69 = sadd.s32 %s41, 4
  %s70 = sld [smem:[#allocation5 + %s69]]
  %s71 = sld [smem:[#allocation6 + %s69]]
  %s72 = scalar_lea.vmem %s2, %s70
  %v73 = vld [vmem:[%s72] sm:$0x1]
  %s74 = scalar_lea.vmem %s3, %s71
  %v75 = vld [vmem:[%s74] sm:$0x1]
  %s76 = sadd.s32 %s41, 5
  %s77 = sld [smem:[#allocation5 + %s76]]
  %s78 = sld [smem:[#allocation6 + %s76]]
  %s79 = scalar_lea.vmem %s2, %s77
  %v80 = vld [vmem:[%s79] sm:$0x1]
  %s81 = scalar_lea.vmem %s3, %s78
  %v82 = vld [vmem:[%s81] sm:$0x1]
  %s83 = sadd.s32 %s41, 6
  %s84 = sld [smem:[#allocation5 + %s83]]
  %s85 = sld [smem:[#allocation6 + %s83]]
  %s86 = scalar_lea.vmem %s2, %s84
  %v87 = vld [vmem:[%s86] sm:$0x1]
  %s88 = scalar_lea.vmem %s3, %s85
  %v89 = vld [vmem:[%s88] sm:$0x1]
  %s90 = sadd.s32 %s41, 7
  %s91 = sld [smem:[#allocation5 + %s90]]
  %s92 = sld [smem:[#allocation6 + %s90]]
  %s93 = scalar_lea.vmem %s2, %s91
  %v94 = vld [vmem:[%s93] sm:$0x1]
  %s95 = scalar_lea.vmem %s3, %s92
  %v96 = vld [vmem:[%s95] sm:$0x1]
  %v98 = vrot.slane %v52, 7
  %v101 = vrot.slane %v59, 6
  %v104 = vrot.slane %v66, 5
  %v107 = vrot.slane %v73, 4
  %v110 = vrot.slane %v80, 3
  %v113 = vrot.slane %v87, 2
  %v116 = vrot.slane %v94, 1
  %vm118 = vcmask 1040384
  %v119 = vsel %vm118, %v45, %v98
  %vm120 = vcmask 1041408
  %v121 = vsel %vm120, %v119, %v101
  %vm122 = vcmask 1042432
  %v123 = vsel %vm122, %v121, %v104
  %vm124 = vcmask 1043456
  %v125 = vsel %vm124, %v123, %v107
  %vm126 = vcmask 1044480
  %v127 = vsel %vm126, %v125, %v110
  %vm128 = vcmask 1045504
  %v129 = vsel %vm128, %v127, %v113
  %vm130 = vcmask 1046528
  %v131 = vsel %vm130, %v129, %v116
  %vm132 = vcmask 408576
  %133 = vst.msk [vmem:[#allocation2] sm:$0xff] %vm132, %v131
  %v135 = vrot.slane %v54, 7
  %v138 = vrot.slane %v61, 6
  %v141 = vrot.slane %v68, 5
  %v144 = vrot.slane %v75, 4
  %v147 = vrot.slane %v82, 3
  %v150 = vrot.slane %v89, 2
  %v153 = vrot.slane %v96, 1
  %v155 = vsel %vm118, %v47, %v135
  %v156 = vsel %vm120, %v155, %v138
  %v157 = vsel %vm122, %v156, %v141
  %v158 = vsel %vm124, %v157, %v144
  %v159 = vsel %vm126, %v158, %v147
  %v160 = vsel %vm128, %v159, %v150
  %v161 = vsel %vm130, %v160, %v153
  %162 = vst.msk [vmem:[#allocation3] sm:$0xff] %vm132, %v161
  %v163 = vld [vmem:[#allocation2] sm:$0xff]
  %v164 = vld [vmem:[%s4] sm:$0xff]
  %v165 = vld [vmem:[%s4 + $0x8] sm:$0xff]
  %v166 = vld [vmem:[%s4 + $0x10] sm:$0xff]
  %v167 = vld [vmem:[%s4 + $0x18] sm:$0xff]
  %v168 = vld [vmem:[%s4 + $0x20] sm:$0xff]
  %v169 = vld [vmem:[%s4 + $0x28] sm:$0xff]
  %v170 = vld [vmem:[%s4 + $0x30] sm:$0x3]
  %v171 = vld [vmem:[#allocation3] sm:$0xff]
  %v172 = vld [vmem:[%s5] sm:$0xff]
  %v173 = vld [vmem:[%s5 + $0x8] sm:$0xff]
  %v174 = vld [vmem:[%s5 + $0x10] sm:$0xff]
  %v175 = vld [vmem:[%s5 + $0x18] sm:$0xff]
  %v176 = vld [vmem:[%s5 + $0x20] sm:$0xff]
  %v177 = vld [vmem:[%s5 + $0x28] sm:$0xff]
  %v178 = vld [vmem:[%s5 + $0x30] sm:$0x3]
  %v180 = vsel %vm132, %v171, 0
  %v183 = vsel %vm120, %v178, 0
  %185 = vmatprep.subr.mxu0 0.0
  %186 = vmatpush1.msra.mxu0 %v172
  %187 = vmatprep.subr.mxu0 0.0
  %188 = vmatpush1.msra.mxu0 %v173
  %189 = vmatprep.subr.mxu0 0.0
  %190 = vmatpush1.msra.mxu0 %v174
  %191 = vmatprep.subr.mxu0 0.0
  %192 = vmatpush1.msra.mxu0 %v175
  %193 = vmatprep.subr.mxu0 0.0
  %194 = vmatpush1.msra.mxu0 %v176
  %195 = vmatprep.subr.mxu0 0.0
  %196 = vmatpush1.msra.mxu0 %v177
  %197 = vmatprep.subr.mxu0 0.0
  %198 = vmatpush1.msra.mxu0 %v183
  %199 = vmatprep.subr.mxu0 0.0
  %200 = vmatpush1.msra.mxu0 0.0
  %201 = vmatprep.subr.mxu0 0.0
  %202 = vmatpush1.msra.mxu0 0.0
  %203 = vmatprep.subr.mxu0 0.0
  %204 = vmatpush1.msra.mxu0 0.0
  %205 = vmatprep.subr.mxu0 0.0
  %206 = vmatpush1.msra.mxu0 0.0
  %207 = vmatprep.subr.mxu0 0.0
  %208 = vmatpush1.msra.mxu0 0.0
  %209 = vmatprep.subr.mxu0 0.0
  %210 = vmatpush1.msra.mxu0 0.0
  %211 = vmatprep.subr.mxu0 0.0
  %212 = vmatpush1.msra.mxu0 0.0
  %213 = vmatprep.subr.mxu0 0.0
  %214 = vmatpush1.msra.mxu0 0.0
  %215 = vmatprep.subr.mxu0 0.0
  %216 = vmatpush1.msra.mxu0 0.0
  %217 = vmatprep.subr.mxu0 0.0
  %218 = vmatpush1.msra.mxu0 0.0
  %219 = vmatprep.subr.mxu0 0.0
  %220 = vmatpush1.msra.mxu0 0.0
  %221 = vmatprep.subr.mxu0 0.0
  %222 = vmatpush1.msra.mxu0 0.0
  %223 = vmatprep.subr.mxu0 0.0
  %224 = vmatpush1.msra.mxu0 0.0
  %225 = vmatprep.subr.mxu0 0.0
  %226 = vmatpush1.msra.mxu0 0.0
  %227 = vmatprep.subr.mxu0 0.0
  %228 = vmatpush1.msra.mxu0 0.0
  %229 = vmatprep.subr.mxu0 0.0
  %230 = vmatpush1.msra.mxu0 0.0
  %231 = vmatprep.subr.mxu0 0.0
  %232 = vmatpush1.msra.mxu0 0.0
  %233 = vmatprep.subr.mxu0 0.0
  %234 = vmatpush1.msra.mxu0 0.0
  %235 = vmatprep.subr.mxu0 0.0
  %236 = vmatpush1.msra.mxu0 0.0
  %237 = vmatprep.subr.mxu0 0.0
  %238 = vmatpush1.msra.mxu0 0.0
  %239 = vmatprep.subr.mxu0 0.0
  %240 = vmatpush1.msra.mxu0 0.0
  %241 = vmatprep.subr.mxu0 0.0
  %242 = vmatpush1.msra.mxu0 0.0
  %243 = vmatprep.subr.mxu0 0.0
  %244 = vmatpush1.msra.mxu0 0.0
  %245 = vmatprep.subr.mxu0 0.0
  %246 = vmatpush1.msra.mxu0 0.0
  %247 = vmatprep.subr.mxu0 0.0
  %248 = vmatpush1.msra.mxu0 0.0
  %249 = vmatprep.mubr.f32.mxu0 0.0
  %250 = vmatmul.mubr.f32.gmra.mrb[0].mxu0 %v180
  %v251 = vpop.f32.mrb[0].mxu0
  %v252 = vadd.f32 0.0, %v251
  %v253 = vpop.f32.mrb[0].mxu0
  %254 = vdwg.mxu0
  %v256 = vsel %vm132, %v163, 0
  %v259 = vsel %vm120, %v170, 0
  %261 = vmatprep.subr.mxu0 0.0
  %262 = vmatpush1.msra.mxu0 %v164
  %263 = vmatprep.subr.mxu0 0.0
  %264 = vmatpush1.msra.mxu0 %v165
  %265 = vmatprep.subr.mxu0 0.0
  %266 = vmatpush1.msra.mxu0 %v166
  %267 = vmatprep.subr.mxu0 0.0
  %268 = vmatpush1.msra.mxu0 %v167
  %269 = vmatprep.subr.mxu0 0.0
  %270 = vmatpush1.msra.mxu0 %v168
  %271 = vmatprep.subr.mxu0 0.0
  %272 = vmatpush1.msra.mxu0 %v169
  %273 = vmatprep.subr.mxu0 0.0
  %274 = vmatpush1.msra.mxu0 %v259
  %275 = vmatprep.subr.mxu0 0.0
  %276 = vmatpush1.msra.mxu0 0.0
  %277 = vmatprep.subr.mxu0 0.0
  %278 = vmatpush1.msra.mxu0 0.0
  %279 = vmatprep.subr.mxu0 0.0
  %280 = vmatpush1.msra.mxu0 0.0
  %281 = vmatprep.subr.mxu0 0.0
  %282 = vmatpush1.msra.mxu0 0.0
  %283 = vmatprep.subr.mxu0 0.0
  %284 = vmatpush1.msra.mxu0 0.0
  %285 = vmatprep.subr.mxu0 0.0
  %286 = vmatpush1.msra.mxu0 0.0
  %287 = vmatprep.subr.mxu0 0.0
  %288 = vmatpush1.msra.mxu0 0.0
  %289 = vmatprep.subr.mxu0 0.0
  %290 = vmatpush1.msra.mxu0 0.0
  %291 = vmatprep.subr.mxu0 0.0
  %292 = vmatpush1.msra.mxu0 0.0
  %293 = vmatprep.subr.mxu0 0.0
  %294 = vmatpush1.msra.mxu0 0.0
  %295 = vmatprep.subr.mxu0 0.0
  %296 = vmatpush1.msra.mxu0 0.0
  %297 = vmatprep.subr.mxu0 0.0
  %298 = vmatpush1.msra.mxu0 0.0
  %299 = vmatprep.subr.mxu0 0.0
  %300 = vmatpush1.msra.mxu0 0.0
  %301 = vmatprep.subr.mxu0 0.0
  %302 = vmatpush1.msra.mxu0 0.0
  %303 = vmatprep.subr.mxu0 0.0
  %304 = vmatpush1.msra.mxu0 0.0
  %305 = vmatprep.subr.mxu0 0.0
  %306 = vmatpush1.msra.mxu0 0.0
  %307 = vmatprep.subr.mxu0 0.0
  %308 = vmatpush1.msra.mxu0 0.0
  %309 = vmatprep.subr.mxu0 0.0
  %310 = vmatpush1.msra.mxu0 0.0
  %311 = vmatprep.subr.mxu0 0.0
  %312 = vmatpush1.msra.mxu0 0.0
  %313 = vmatprep.subr.mxu0 0.0
  %314 = vmatpush1.msra.mxu0 0.0
  %315 = vmatprep.subr.mxu0 0.0
  %316 = vmatpush1.msra.mxu0 0.0
  %317 = vmatprep.subr.mxu0 0.0
  %318 = vmatpush1.msra.mxu0 0.0
  %319 = vmatprep.subr.mxu0 0.0
  %320 = vmatpush1.msra.mxu0 0.0
  %321 = vmatprep.subr.mxu0 0.0
  %322 = vmatpush1.msra.mxu0 0.0
  %323 = vmatprep.subr.mxu0 0.0
  %324 = vmatpush1.msra.mxu0 0.0
  %325 = vmatprep.mubr.f32.mxu0 0.0
  %326 = vmatmul.mubr.f32.gmra.mrb[0].mxu0 %v256
  %v327 = vpop.f32.mrb[0].mxu0
  %v328 = vadd.f32 %v252, %v327
  %v329 = vpop.f32.mrb[0].mxu0
  %330 = vdwg.mxu0
  %v331 = vld [vmem:[%s6] sm:$0x1]
  %v333 = vlaneseq
  %v334 = vshrl.u32 %v333, 7
  %v335 = vsub.s32 0, %v334
  %v336 = vrot.slane %v331, %v335
  %v338 = vadd.f32 %v328, %v336
  %v339 = vmax.f32 %v338, 0.0
  %v340 = vld [vmem:[%s7] sm:$0x1]
  %v342 = vlaneseq
  %v343 = vshrl.u32 %v342, 7
  %v344 = vsub.s32 0, %v343
  %v345 = vrot.slane %v340, %v344
  %v347 = vmul.f32 %v339, %v345
  %vm348 = vcmask 80896
  %v349 = vsel %vm348, %v347, 0.0
  %350 = vadd.xlane.f32.xlu0 %v349
  %v351 = vpop.xlane.xlu0 %350
  %v352 = vld [vmem:[#allocation7] sm:$0x1]
  %v354 = vlaneseq
  %v355 = vshrl.u32 %v354, 7
  %v356 = vsub.s32 0, %v355
  %v357 = vrot.slane %v352, %v356
  %v359 = vadd.f32 %v351, %v357
  %vm360 = vcmask 7168
  %361 = vst.msk [vmem:[%s9] sm:$0xff] %vm360, %v359
  // Predicated region
  $region30: #{recommender_forward.1} parent=0 // pred_check
    _
  $region31: #{recommender_forward.1} parent=0 // pred_check_branch
    %363 = sbr.rel (0) target = $region33
  $region32: #{recommender_forward.1} parent=0 // pred_region
    _
  $region33: #{recommender_forward.1} parent=0 // pred_fallthru
    _
  // Predicated region
  $region34: #{recommender_forward.1} parent=0 // pred_check
    _
  $region35: #{recommender_forward.1} parent=0 // pred_check_branch
    %365 = sbr.rel (0) target = $region37
  $region36: #{recommender_forward.1} parent=0 // pred_region
    _
  $region37: #{recommender_forward.1} parent=0 // pred_fallthru
    _

</llo_original>
